<compile_context>
chip_gen: v7x
topology: tpu7x:2x2x1
jax: 0.10.0
libtpu: 0.0.40
codegen_flags: <defaults>
</compile_context>

<pallas_src>
import functools

import jax
import jax.numpy as jnp
from jax.experimental import pallas as pl
from jax.experimental.pallas import tpu as pltpu

LANE = 128  # padded feature width for the hidden layers / weight slab


def dqn_kernel(x_ref, w_ref, b_ref, out_ref):
    x = x_ref[...]                     # (TB, S) f32 -- raw, unpadded state rows
    w1 = w_ref[0]                      # (128, 128) f32, rows [:S], cols [:H] real
    w2 = w_ref[1]                      # (128, 128) f32
    w3 = w_ref[2]                      # (128, 128) f32

    # Layer 1: state_dim is tiny (4), so do it as S rank-1 VPU updates instead
    # of an MXU matmul with a 4-deep contraction.  Columns >= hidden stay 0
    # because W1's and b1's padding is zero.
    acc = x[:, 0:1] * w1[0:1, :]
    for s in range(1, x.shape[1]):     # static, unrolled (state_dim - 1 iters)
        acc = acc + x[:, s:s + 1] * w1[s:s + 1, :]
    h1 = jnp.maximum(acc + b_ref[0:1, :], 0.0)           # (TB, 128) f32

    # Layers 2 & 3: dense 128-deep MXU matmuls with f32 accumulation.
    h2 = jnp.dot(h1, w2, preferred_element_type=jnp.float32)
    h2 = jnp.maximum(h2 + b_ref[1:2, :], 0.0)            # (TB, 128) f32
    q = jnp.dot(h2, w3, preferred_element_type=jnp.float32)

    # Narrow store: only the real action columns ever leave the kernel.
    out_ref[...] = q[:, :out_ref.shape[-1]].astype(out_ref.dtype)


def pack_dqn_params(params, state_dim, hidden_size, action_dim):
    """Zero-pad every feature dim to LANE and pack weights/biases into slabs."""
    w1, b1, w2, b2, w3 = params
    assert state_dim <= LANE and hidden_size <= LANE and action_dim <= LANE
    W1 = jnp.zeros((LANE, LANE), jnp.float32).at[:state_dim, :hidden_size].set(w1)
    W2 = jnp.zeros((LANE, LANE), jnp.float32).at[:hidden_size, :hidden_size].set(w2)
    W3 = jnp.zeros((LANE, LANE), jnp.float32).at[:hidden_size, :action_dim].set(w3)
    w_slab = jnp.stack([W1, W2, W3], axis=0)              # (3, 128, 128) f32
    b_slab = (jnp.zeros((2, LANE), jnp.float32)
              .at[0, :hidden_size].set(b1.reshape(-1))
              .at[1, :hidden_size].set(b2.reshape(-1)))   # (2, 128) f32
    return w_slab, b_slab


def _round_up(n, m):
    return ((n + m - 1) // m) * m


@functools.partial(jax.jit, static_argnames=("action_dim",))
def dqn_forward(x, w_slab, b_slab, *, action_dim):
    B, S = x.shape
    x = x.astype(jnp.float32)

    # Batch tiling: big tiles amortize the ~600-cycle per-grid-step overhead
    # (best for single-TC v5e/v6e); batches > 1024 give >= 2 grid steps so the
    # "parallel" batch axis can shard across the two TensorCores on v7x.
    TB = min(1024, _round_up(B, 8))
    Bp = _round_up(B, TB)
    if Bp != B:  # the only wrapper-side pad, on the raw 16 B/row input
        x = jnp.pad(x, ((0, Bp - B), (0, 0)))
    grid = (Bp // TB,)

    out = pl.pallas_call(
        dqn_kernel,
        out_shape=jax.ShapeDtypeStruct((Bp, action_dim), jnp.float32),
        grid=grid,
        in_specs=[
            pl.BlockSpec((TB, S), lambda i: (i, 0)),            # raw streaming x tile
            pl.BlockSpec((3, LANE, LANE), lambda i: (0, 0, 0)),  # resident weight slab
            pl.BlockSpec((2, LANE), lambda i: (0, 0)),           # resident bias slab
        ],
        out_specs=pl.BlockSpec((TB, action_dim), lambda i: (i, 0)),  # narrow Q store
        compiler_params=pltpu.CompilerParams(
            dimension_semantics=("parallel",)),                  # megacore on v7x
    )(x, w_slab, b_slab)
    return out[:B]


def dqn_forward_auto(x, params, w_slab, b_slab, *, action_dim, min_pallas_batch=128):
    """Small-batch fallback: at tiny B the pallas_call is pure launch overhead."""
    if x.shape[0] < min_pallas_batch:
        return dqn_reference_f32(x, params)
    return dqn_forward(x, w_slab, b_slab, action_dim=action_dim)


def init_dqn_params(key, state_dim=4, action_dim=2, hidden_size=24):
    """PyTorch nn.Linear default init: U[-1/sqrt(fan_in), +1/sqrt(fan_in)]."""
    k1, k2, k3, k4, k5 = jax.random.split(key, 5)

    def unif(k, shape, fan_in):
        bound = 1.0 / jnp.sqrt(jnp.float32(fan_in))
        return jax.random.uniform(k, shape, jnp.float32, -bound, bound)

    w1 = unif(k1, (state_dim, hidden_size), state_dim)
    b1 = unif(k2, (1, hidden_size), state_dim)
    w2 = unif(k3, (hidden_size, hidden_size), hidden_size)
    b2 = unif(k4, (1, hidden_size), hidden_size)
    w3 = unif(k5, (hidden_size, action_dim), hidden_size)  # final layer: bias=False
    return (w1, b1, w2, b2, w3)


def dqn_reference_f32(x, params):
    """Pure-JAX fp32 reference (forced highest-precision dots)."""
    w1, b1, w2, b2, w3 = params
    hp = jax.lax.Precision.HIGHEST
    h1 = jnp.maximum(jnp.dot(x, w1, precision=hp) + b1, 0.0)
    h2 = jnp.maximum(jnp.dot(h1, w2, precision=hp) + b2, 0.0)
    return jnp.dot(h2, w3, precision=hp)


if __name__ == "__main__":
    key = jax.random.PRNGKey(0)
    pkey, xkey_small, xkey_large = jax.random.split(key, 3)

    state_dim, action_dim, hidden_size = 4, 2, 24
    params = init_dqn_params(pkey, state_dim, action_dim, hidden_size)
    w_slab, b_slab = pack_dqn_params(params, state_dim, hidden_size, action_dim)

    # Two batch sizes: the tiny demo batch and a bigger one that exercises the
    # batch-rounding pad (300 -> 304 rows) and a larger tile.
    for batch, xkey in ((8, xkey_small), (300, xkey_large)):
        x = jax.random.normal(xkey, (batch, state_dim), jnp.float32)
        q = dqn_forward(x, w_slab, b_slab, action_dim=action_dim)
        q = jax.block_until_ready(q)
        assert q.shape == (batch, action_dim)

        # f32 weights/activations in the kernel: the only deviation from the
        # fp32 reference is MXU f32-matmul pass rounding, so this tolerance is
        # generous while still catching any wiring/padding bug (O(1) errors).
        ref = dqn_reference_f32(x, params)
        assert jnp.allclose(q, ref, atol=2e-2, rtol=2e-2), f"mismatch at B={batch}"

    print("KERNEL_OK")
</pallas_src>

<mosaic_0001>
module attributes {stable_mosaic.version = 11 : i64} {
  func.func @dqn_kernel(%arg0: i32, %arg1: memref<8x4xf32, #tpu.memory_space<vmem>>, %arg2: memref<3x128x128xf32, #tpu.memory_space<vmem>>, %arg3: memref<2x128xf32, #tpu.memory_space<vmem>>, %arg4: memref<8x2xf32, #tpu.memory_space<vmem>>) attributes {dimension_semantics = [#tpu.dimension_semantics<parallel>], iteration_bounds = array<i64: 1>, scalar_prefetch = 0 : i64, scratch_operands = 0 : i64, tpu.core_type = #tpu.core_type<tc>, window_params = [{transform_indices = @transform_0, window_bounds = array<i64: 8, 4>}, {pipeline_mode = #tpu.pipeline_mode<synchronous>, transform_indices = @transform_1, window_bounds = array<i64: 3, 128, 128>}, {pipeline_mode = #tpu.pipeline_mode<synchronous>, transform_indices = @transform_2, window_bounds = array<i64: 2, 128>}, {transform_indices = @transform_3, window_bounds = array<i64: 8, 2>}]} {
    %c0 = arith.constant 0 : index
    %c0_0 = arith.constant 0 : index
    %0 = vector.load %arg1[%c0, %c0_0] : memref<8x4xf32, #tpu.memory_space<vmem>>, vector<8x4xf32>
    %c0_1 = arith.constant 0 : index
    %c0_2 = arith.constant 0 : index
    %c0_3 = arith.constant 0 : index
    %1 = vector.load %arg2[%c0_1, %c0_2, %c0_3] : memref<3x128x128xf32, #tpu.memory_space<vmem>>, vector<1x128x128xf32>
    %2 = vector.shape_cast %1 : vector<1x128x128xf32> to vector<128x128xf32>
    %c1 = arith.constant 1 : index
    %c0_4 = arith.constant 0 : index
    %c0_5 = arith.constant 0 : index
    %3 = vector.load %arg2[%c1, %c0_4, %c0_5] : memref<3x128x128xf32, #tpu.memory_space<vmem>>, vector<1x128x128xf32>
    %4 = vector.shape_cast %3 : vector<1x128x128xf32> to vector<128x128xf32>
    %c2 = arith.constant 2 : index
    %c0_6 = arith.constant 0 : index
    %c0_7 = arith.constant 0 : index
    %5 = vector.load %arg2[%c2, %c0_6, %c0_7] : memref<3x128x128xf32, #tpu.memory_space<vmem>>, vector<1x128x128xf32>
    %6 = vector.shape_cast %5 : vector<1x128x128xf32> to vector<128x128xf32>
    %7 = vector.extract_strided_slice %0 {offsets = [0, 0], sizes = [8, 1], strides = [1, 1]} : vector<8x4xf32> to vector<8x1xf32>
    %8 = vector.extract_strided_slice %2 {offsets = [0, 0], sizes = [1, 128], strides = [1, 1]} : vector<128x128xf32> to vector<1x128xf32>
    %9 = vector.broadcast %7 : vector<8x1xf32> to vector<8x128xf32>
    %10 = vector.broadcast %8 : vector<1x128xf32> to vector<8x128xf32>
    %11 = arith.mulf %9, %10 : vector<8x128xf32>
    %12 = vector.extract_strided_slice %0 {offsets = [0, 1], sizes = [8, 1], strides = [1, 1]} : vector<8x4xf32> to vector<8x1xf32>
    %13 = vector.extract_strided_slice %2 {offsets = [1, 0], sizes = [1, 128], strides = [1, 1]} : vector<128x128xf32> to vector<1x128xf32>
    %14 = vector.broadcast %12 : vector<8x1xf32> to vector<8x128xf32>
    %15 = vector.broadcast %13 : vector<1x128xf32> to vector<8x128xf32>
    %16 = arith.mulf %14, %15 : vector<8x128xf32>
    %17 = arith.addf %11, %16 : vector<8x128xf32>
    %18 = vector.extract_strided_slice %0 {offsets = [0, 2], sizes = [8, 1], strides = [1, 1]} : vector<8x4xf32> to vector<8x1xf32>
    %19 = vector.extract_strided_slice %2 {offsets = [2, 0], sizes = [1, 128], strides = [1, 1]} : vector<128x128xf32> to vector<1x128xf32>
    %20 = vector.broadcast %18 : vector<8x1xf32> to vector<8x128xf32>
    %21 = vector.broadcast %19 : vector<1x128xf32> to vector<8x128xf32>
    %22 = arith.mulf %20, %21 : vector<8x128xf32>
    %23 = arith.addf %17, %22 : vector<8x128xf32>
    %24 = vector.extract_strided_slice %0 {offsets = [0, 3], sizes = [8, 1], strides = [1, 1]} : vector<8x4xf32> to vector<8x1xf32>
    %25 = vector.extract_strided_slice %2 {offsets = [3, 0], sizes = [1, 128], strides = [1, 1]} : vector<128x128xf32> to vector<1x128xf32>
    %26 = vector.broadcast %24 : vector<8x1xf32> to vector<8x128xf32>
    %27 = vector.broadcast %25 : vector<1x128xf32> to vector<8x128xf32>
    %28 = arith.mulf %26, %27 : vector<8x128xf32>
    %29 = arith.addf %23, %28 : vector<8x128xf32>
    %c0_8 = arith.constant 0 : index
    %c0_9 = arith.constant 0 : index
    %30 = vector.load %arg3[%c0_8, %c0_9] : memref<2x128xf32, #tpu.memory_space<vmem>>, vector<1x128xf32>
    %31 = vector.broadcast %30 : vector<1x128xf32> to vector<8x128xf32>
    %32 = arith.addf %29, %31 : vector<8x128xf32>
    %cst = arith.constant 0.000000e+00 : f32
    %33 = vector.broadcast %cst : f32 to vector<8x128xf32>
    %34 = arith.maximumf %32, %33 : vector<8x128xf32>
    %cst_10 = arith.constant dense<0.000000e+00> : vector<8x128xf32>
    %35 = tpu.matmul %34, %4, %cst_10 {dimension_numbers = #tpu.dot_dimension_numbers<[1], [0], [0], [1], [0, 0, 1, 1], [], []>} : vector<8x128xf32>, vector<128x128xf32>, vector<8x128xf32> -> vector<8x128xf32>
    %c1_11 = arith.constant 1 : index
    %c0_12 = arith.constant 0 : index
    %36 = vector.load %arg3[%c1_11, %c0_12] : memref<2x128xf32, #tpu.memory_space<vmem>>, vector<1x128xf32>
    %37 = vector.broadcast %36 : vector<1x128xf32> to vector<8x128xf32>
    %38 = arith.addf %35, %37 : vector<8x128xf32>
    %cst_13 = arith.constant 0.000000e+00 : f32
    %39 = vector.broadcast %cst_13 : f32 to vector<8x128xf32>
    %40 = arith.maximumf %38, %39 : vector<8x128xf32>
    %cst_14 = arith.constant dense<0.000000e+00> : vector<8x128xf32>
    %41 = tpu.matmul %40, %6, %cst_14 {dimension_numbers = #tpu.dot_dimension_numbers<[1], [0], [0], [1], [0, 0, 1, 1], [], []>} : vector<8x128xf32>, vector<128x128xf32>, vector<8x128xf32> -> vector<8x128xf32>
    %42 = vector.extract_strided_slice %41 {offsets = [0, 0], sizes = [8, 2], strides = [1, 1]} : vector<8x128xf32> to vector<8x2xf32>
    %c0_15 = arith.constant 0 : index
    %c0_16 = arith.constant 0 : index
    %43 = vector.load %arg4[%c0_15, %c0_16] : memref<8x2xf32, #tpu.memory_space<vmem>>, vector<8x2xf32>
    tpu.vector_store %arg4[%c0_15, %c0_16], %42 {strides = array<i32>} : memref<8x2xf32, #tpu.memory_space<vmem>>, vector<8x2xf32>,
    return
  }
  func.func @transform_0(%arg0: i32) -> (i32, i32) {
    %c0_i32 = arith.constant 0 : i32
    %c0_i32_0 = arith.constant 0 : i32
    return %arg0, %c0_i32 : i32, i32
  }
  func.func @transform_1(%arg0: i32) -> (i32, i32, i32) {
    %c0_i32 = arith.constant 0 : i32
    %c0_i32_0 = arith.constant 0 : i32
    %c0_i32_1 = arith.constant 0 : i32
    %c0_i32_2 = arith.constant 0 : i32
    return %c0_i32, %c0_i32_0, %c0_i32_1 : i32, i32, i32
  }
  func.func @transform_2(%arg0: i32) -> (i32, i32) {
    %c0_i32 = arith.constant 0 : i32
    %c0_i32_0 = arith.constant 0 : i32
    %c0_i32_1 = arith.constant 0 : i32
    return %c0_i32, %c0_i32_0 : i32, i32
  }
  func.func @transform_3(%arg0: i32) -> (i32, i32) {
    %c0_i32 = arith.constant 0 : i32
    %c0_i32_0 = arith.constant 0 : i32
    return %arg0, %c0_i32 : i32, i32
  }
}

</mosaic_0001>

<llo_original>
// kernel: dqn_forward.1
$region0: #{dqn_forward.1}
  #allocation0 [shape = 'u32[]', space=smem, size = 0x4, offset = 0x4, fixed_abs, tag = 'smem constant byte address 0x4 - core index']
  #allocation1 [shape = 'u32[144,128]{1,0:T(1,128)}', space=vmem, size = 0x12000, scoped, tag = 'internal scratch']
  %s0 = inlined_call_operand.vmem [shape: f32[8,4], index: 0, kind: input, shape index: {}]
  %s1 = inlined_call_operand.hbm [shape: f32[3,128,128], index: 1, kind: input, shape index: {}]
  %s2 = inlined_call_operand.vmem [shape: f32[2,128], index: 2, kind: input, shape index: {}]
  %s3 = inlined_call_operand.vmem [shape: f32[8,2], index: 3, kind: output, shape index: {}]
  %s4 = sld [smem:[#allocation0]]
  $region26: #{dqn_forward.1} parent=0
    _
  %s6 = ssub.s32 1, %s4
  %s7 = scalar_select 0, %s6, %s4
  $region1: #{dqn_forward.1} parent=0
    #allocation2 [shape = 'u8[196608]{0}', space=vmem, size = 0x30000, scoped, tag = 'input window, operand 1, single buffered']
    #allocation3 [shape = 's32[1]{0}', space=sflag, size = 0x4, scoped, tag = 'scoped memory for dqn_forward.1']
    %8 = vsyncpa [#allocation3], 0
    // Predicated region
    $region2: #{dqn_forward.1} parent=1 // pred_check
      _
    $region3: #{dqn_forward.1} parent=1 // pred_check_branch
      %10 = sbr.rel (0) target = $region5
    $region4: #{dqn_forward.1} parent=1 // pred_region
      _
    $region5: #{dqn_forward.1} parent=1 // pred_fallthru
      _
    // Predicated region
    $region6: #{dqn_forward.1} parent=1 // pred_check
      _
    $region7: #{dqn_forward.1} parent=1 // pred_check_branch
      %12 = sbr.rel (0) target = $region9
    $region8: #{dqn_forward.1} parent=1 // pred_region
      %s14 = ssub.s32 6144, 6144
      %15 = vsyncadd [#allocation3], %s14
      %s16 = sshll.u32 [#allocation2], 4
      %s17 = int_to_ptr.vmem [resolvable:$true] %s16
      %22 = dma.hbm_to_vmem [thread:$0]  %s1, 6144, %s17, [#allocation3], 128, 128, 8
    $region9: #{dqn_forward.1} parent=1 // pred_fallthru
      _
    // Predicated region
    $region10: #{dqn_forward.1} parent=1 // pred_check
      _
    $region11: #{dqn_forward.1} parent=1 // pred_check_branch
      %24 = sbr.rel (0) target = $region13
    $region12: #{dqn_forward.1} parent=1 // pred_region
      _
    $region13: #{dqn_forward.1} parent=1 // pred_fallthru
      _
    // Predicated region
    $region14: #{dqn_forward.1} parent=1 // pred_check
      _
    $region15: #{dqn_forward.1} parent=1 // pred_check_branch
      %26 = sbr.rel (0) target = $region17
    $region16: #{dqn_forward.1} parent=1 // pred_region
      %27 = dma.done [#allocation3], 6144
    $region17: #{dqn_forward.1} parent=1 // pred_fallthru
      _
    %v28 = vld [vmem:[%s0] sm:$0xff]
    %v29 = vld [vmem:[#allocation2] sm:$0xff]
    %s30 = scalar_lea.vmem [#allocation2], 128
    %v31 = vld [vmem:[%s30] sm:$0xff]
    %v32 = vld [vmem:[%s30 + $0x8] sm:$0xff]
    %v33 = vld [vmem:[%s30 + $0x10] sm:$0xff]
    %v34 = vld [vmem:[%s30 + $0x18] sm:$0xff]
    %v35 = vld [vmem:[%s30 + $0x20] sm:$0xff]
    %v36 = vld [vmem:[%s30 + $0x28] sm:$0xff]
    %v37 = vld [vmem:[%s30 + $0x30] sm:$0xff]
    %v38 = vld [vmem:[%s30 + $0x38] sm:$0xff]
    %v39 = vld [vmem:[%s30 + $0x40] sm:$0xff]
    %v40 = vld [vmem:[%s30 + $0x48] sm:$0xff]
    %v41 = vld [vmem:[%s30 + $0x50] sm:$0xff]
    %v42 = vld [vmem:[%s30 + $0x58] sm:$0xff]
    %v43 = vld [vmem:[%s30 + $0x60] sm:$0xff]
    %v44 = vld [vmem:[%s30 + $0x68] sm:$0xff]
    %v45 = vld [vmem:[%s30 + $0x70] sm:$0xff]
    %v46 = vld [vmem:[%s30 + $0x78] sm:$0xff]
    %s47 = scalar_lea.vmem [#allocation2], 256
    %v48 = vld [vmem:[%s47] sm:$0xff]
    %v49 = vld [vmem:[%s47 + $0x8] sm:$0xff]
    %v50 = vld [vmem:[%s47 + $0x10] sm:$0xff]
    %v51 = vld [vmem:[%s47 + $0x18] sm:$0xff]
    %v52 = vld [vmem:[%s47 + $0x20] sm:$0xff]
    %v53 = vld [vmem:[%s47 + $0x28] sm:$0xff]
    %v54 = vld [vmem:[%s47 + $0x30] sm:$0xff]
    %v55 = vld [vmem:[%s47 + $0x38] sm:$0xff]
    %v56 = vld [vmem:[%s47 + $0x40] sm:$0xff]
    %v57 = vld [vmem:[%s47 + $0x48] sm:$0xff]
    %v58 = vld [vmem:[%s47 + $0x50] sm:$0xff]
    %v59 = vld [vmem:[%s47 + $0x58] sm:$0xff]
    %v60 = vld [vmem:[%s47 + $0x60] sm:$0xff]
    %v61 = vld [vmem:[%s47 + $0x68] sm:$0xff]
    %v62 = vld [vmem:[%s47 + $0x70] sm:$0xff]
    %v63 = vld [vmem:[%s47 + $0x78] sm:$0xff]
    %65 = vset.pattern.permute.xlu0 0
    %66 = vperm.xlu0 %65, %v28
    %v67 = vpop.permute.xlu0 %66
    %v69 = vlaneseq
    %v70 = vshrl.u32 %v69, 7
    %v71 = vsub.s32 0, %v70
    %v72 = vrot.slane %v29, %v71
    %v73 = vmul.f32 %v67, %v72
    %74 = vset.pattern.permute.xlu0 1
    %75 = vperm.xlu0 %74, %v28
    %v76 = vpop.permute.xlu0 %75
    %v78 = vlaneseq
    %v79 = vshrl.u32 %v78, 7
    %v80 = vsub.s32 1, %v79
    %v81 = vrot.slane %v29, %v80
    %v82 = vmul.f32 %v76, %v81
    %v83 = vadd.f32 %v73, %v82
    %84 = vset.pattern.permute.xlu0 2
    %85 = vperm.xlu0 %84, %v28
    %v86 = vpop.permute.xlu0 %85
    %v88 = vlaneseq
    %v89 = vshrl.u32 %v88, 7
    %v90 = vsub.s32 2, %v89
    %v91 = vrot.slane %v29, %v90
    %v92 = vmul.f32 %v86, %v91
    %v93 = vadd.f32 %v83, %v92
    %94 = vset.pattern.permute.xlu0 3
    %95 = vperm.xlu0 %94, %v28
    %v96 = vpop.permute.xlu0 %95
    %v98 = vlaneseq
    %v99 = vshrl.u32 %v98, 7
    %v100 = vsub.s32 3, %v99
    %v101 = vrot.slane %v29, %v100
    %v102 = vmul.f32 %v96, %v101
    %v103 = vadd.f32 %v93, %v102
    %v104 = vld [vmem:[%s2] sm:$0x1]
    %v105 = vlaneseq
    %v106 = vshrl.u32 %v105, 7
    %v107 = vsub.s32 0, %v106
    %v108 = vrot.slane %v104, %v107
    %v109 = vadd.f32 %v103, %v108
    %v110 = vmax.f32 %v109, 0.0
    %v111 = vld [vmem:[%s2 + $0x1] sm:$0x1]
    %v112 = vlaneseq
    %v113 = vshrl.u32 %v112, 7
    %v114 = vsub.s32 0, %v113
    %v115 = vrot.slane %v111, %v114
    %116 = vmatprep.subr.mxu0 0.0
    %117 = vmatpush1.msra.mxu0 %v31
    %118 = vmatprep.subr.mxu0 0.0
    %119 = vmatpush1.msra.mxu0 %v32
    %120 = vmatprep.subr.mxu0 0.0
    %121 = vmatpush1.msra.mxu0 %v33
    %122 = vmatprep.subr.mxu0 0.0
    %123 = vmatpush1.msra.mxu0 %v34
    %124 = vmatprep.subr.mxu0 0.0
    %125 = vmatpush1.msra.mxu0 %v35
    %126 = vmatprep.subr.mxu0 0.0
    %127 = vmatpush1.msra.mxu0 %v36
    %128 = vmatprep.subr.mxu0 0.0
    %129 = vmatpush1.msra.mxu0 %v37
    %130 = vmatprep.subr.mxu0 0.0
    %131 = vmatpush1.msra.mxu0 %v38
    %132 = vmatprep.subr.mxu0 0.0
    %133 = vmatpush1.msra.mxu0 %v39
    %134 = vmatprep.subr.mxu0 0.0
    %135 = vmatpush1.msra.mxu0 %v40
    %136 = vmatprep.subr.mxu0 0.0
    %137 = vmatpush1.msra.mxu0 %v41
    %138 = vmatprep.subr.mxu0 0.0
    %139 = vmatpush1.msra.mxu0 %v42
    %140 = vmatprep.subr.mxu0 0.0
    %141 = vmatpush1.msra.mxu0 %v43
    %142 = vmatprep.subr.mxu0 0.0
    %143 = vmatpush1.msra.mxu0 %v44
    %144 = vmatprep.subr.mxu0 0.0
    %145 = vmatpush1.msra.mxu0 %v45
    %146 = vmatprep.subr.mxu0 0.0
    %147 = vmatpush1.msra.mxu0 %v46
    %148 = vmatprep.subr.mxu0 0.0
    %149 = vmatpush1.msra.mxu0 0.0
    %150 = vmatprep.subr.mxu0 0.0
    %151 = vmatpush1.msra.mxu0 0.0
    %152 = vmatprep.subr.mxu0 0.0
    %153 = vmatpush1.msra.mxu0 0.0
    %154 = vmatprep.subr.mxu0 0.0
    %155 = vmatpush1.msra.mxu0 0.0
    %156 = vmatprep.subr.mxu0 0.0
    %157 = vmatpush1.msra.mxu0 0.0
    %158 = vmatprep.subr.mxu0 0.0
    %159 = vmatpush1.msra.mxu0 0.0
    %160 = vmatprep.subr.mxu0 0.0
    %161 = vmatpush1.msra.mxu0 0.0
    %162 = vmatprep.subr.mxu0 0.0
    %163 = vmatpush1.msra.mxu0 0.0
    %164 = vmatprep.subr.mxu0 0.0
    %165 = vmatpush1.msra.mxu0 0.0
    %166 = vmatprep.subr.mxu0 0.0
    %167 = vmatpush1.msra.mxu0 0.0
    %168 = vmatprep.subr.mxu0 0.0
    %169 = vmatpush1.msra.mxu0 0.0
    %170 = vmatprep.subr.mxu0 0.0
    %171 = vmatpush1.msra.mxu0 0.0
    %172 = vmatprep.subr.mxu0 0.0
    %173 = vmatpush1.msra.mxu0 0.0
    %174 = vmatprep.subr.mxu0 0.0
    %175 = vmatpush1.msra.mxu0 0.0
    %176 = vmatprep.subr.mxu0 0.0
    %177 = vmatpush1.msra.mxu0 0.0
    %178 = vmatprep.subr.mxu0 0.0
    %179 = vmatpush1.msra.mxu0 0.0
    %180 = vmatprep.mubr.f32.mxu0 0.0
    %181 = vmatmul.mubr.f32.gmra.mrb[0].mxu0 %v110
    %v182 = vpop.f32.mrb[0].mxu0
    %v183 = vadd.f32 %v115, %v182
    %v184 = vpop.f32.mrb[0].mxu0
    %185 = vdwg.mxu0
    %v186 = vmax.f32 %v183, 0.0
    %187 = vmatprep.subr.mxu0 0.0
    %188 = vmatpush1.msra.mxu0 %v48
    %189 = vmatprep.subr.mxu0 0.0
    %190 = vmatpush1.msra.mxu0 %v49
    %191 = vmatprep.subr.mxu0 0.0
    %192 = vmatpush1.msra.mxu0 %v50
    %193 = vmatprep.subr.mxu0 0.0
    %194 = vmatpush1.msra.mxu0 %v51
    %195 = vmatprep.subr.mxu0 0.0
    %196 = vmatpush1.msra.mxu0 %v52
    %197 = vmatprep.subr.mxu0 0.0
    %198 = vmatpush1.msra.mxu0 %v53
    %199 = vmatprep.subr.mxu0 0.0
    %200 = vmatpush1.msra.mxu0 %v54
    %201 = vmatprep.subr.mxu0 0.0
    %202 = vmatpush1.msra.mxu0 %v55
    %203 = vmatprep.subr.mxu0 0.0
    %204 = vmatpush1.msra.mxu0 %v56
    %205 = vmatprep.subr.mxu0 0.0
    %206 = vmatpush1.msra.mxu0 %v57
    %207 = vmatprep.subr.mxu0 0.0
    %208 = vmatpush1.msra.mxu0 %v58
    %209 = vmatprep.subr.mxu0 0.0
    %210 = vmatpush1.msra.mxu0 %v59
    %211 = vmatprep.subr.mxu0 0.0
    %212 = vmatpush1.msra.mxu0 %v60
    %213 = vmatprep.subr.mxu0 0.0
    %214 = vmatpush1.msra.mxu0 %v61
    %215 = vmatprep.subr.mxu0 0.0
    %216 = vmatpush1.msra.mxu0 %v62
    %217 = vmatprep.subr.mxu0 0.0
    %218 = vmatpush1.msra.mxu0 %v63
    %219 = vmatprep.subr.mxu0 0.0
    %220 = vmatpush1.msra.mxu0 0.0
    %221 = vmatprep.subr.mxu0 0.0
    %222 = vmatpush1.msra.mxu0 0.0
    %223 = vmatprep.subr.mxu0 0.0
    %224 = vmatpush1.msra.mxu0 0.0
    %225 = vmatprep.subr.mxu0 0.0
    %226 = vmatpush1.msra.mxu0 0.0
    %227 = vmatprep.subr.mxu0 0.0
    %228 = vmatpush1.msra.mxu0 0.0
    %229 = vmatprep.subr.mxu0 0.0
    %230 = vmatpush1.msra.mxu0 0.0
    %231 = vmatprep.subr.mxu0 0.0
    %232 = vmatpush1.msra.mxu0 0.0
    %233 = vmatprep.subr.mxu0 0.0
    %234 = vmatpush1.msra.mxu0 0.0
    %235 = vmatprep.subr.mxu0 0.0
    %236 = vmatpush1.msra.mxu0 0.0
    %237 = vmatprep.subr.mxu0 0.0
    %238 = vmatpush1.msra.mxu0 0.0
    %239 = vmatprep.subr.mxu0 0.0
    %240 = vmatpush1.msra.mxu0 0.0
    %241 = vmatprep.subr.mxu0 0.0
    %242 = vmatpush1.msra.mxu0 0.0
    %243 = vmatprep.subr.mxu0 0.0
    %244 = vmatpush1.msra.mxu0 0.0
    %245 = vmatprep.subr.mxu0 0.0
    %246 = vmatpush1.msra.mxu0 0.0
    %247 = vmatprep.subr.mxu0 0.0
    %248 = vmatpush1.msra.mxu0 0.0
    %249 = vmatprep.subr.mxu0 0.0
    %250 = vmatpush1.msra.mxu0 0.0
    %251 = vmatprep.mubr.f32.mxu0 0.0
    %252 = vmatmul.mubr.f32.gmra.mrb[0].mxu0 %v186
    %v253 = vpop.f32.mrb[0].mxu0
    %v254 = vadd.f32 0.0, %v253
    %v255 = vpop.f32.mrb[0].mxu0
    %256 = vdwg.mxu0
    %vm257 = vcmask 15360
    %258 = vst.msk [vmem:[%s3] sm:$0xff] %vm257, %v254
    // Predicated region
    $region18: #{dqn_forward.1} parent=1 // pred_check
      _
    $region19: #{dqn_forward.1} parent=1 // pred_check_branch
      %260 = sbr.rel (0) target = $region21
    $region20: #{dqn_forward.1} parent=1 // pred_region
      _
    $region21: #{dqn_forward.1} parent=1 // pred_fallthru
      _
    // Predicated region
    $region22: #{dqn_forward.1} parent=1 // pred_check
      _
    $region23: #{dqn_forward.1} parent=1 // pred_check_branch
      %262 = sbr.rel (0) target = $region25
    $region24: #{dqn_forward.1} parent=1 // pred_region
      _
    $region25: #{dqn_forward.1} parent=1 // pred_fallthru
      _
    %263 = vsyncpa [#allocation3], 1

</llo_original>
